<compile_context>
chip_gen: v7x
topology: tpu7x:2x2x1
jax: 0.10.0
libtpu: 0.0.40
codegen_flags: <defaults>
</compile_context>

<pallas_src>
import functools

import jax
import jax.numpy as jnp
from jax.experimental import pallas as pl
from jax.experimental.pallas import tpu as pltpu

_LANE = 128


def _round_up(x, m):
    return ((x + m - 1) // m) * m


def _sublane_pack(dtype):
    itemsize = jnp.dtype(dtype).itemsize
    if itemsize >= 4:
        return 8
    if itemsize == 2:
        return 16
    return 32


def _lsq_act_quant_kernel(x_ref, s_ref, o_ref, *, low, high):
    # s_ref: (1,) f32 scalar in SMEM (resident, no per-step DMA stream).
    s = s_ref[0]
    x32 = x_ref[...].astype(jnp.float32)
    rt = x32 / s                                   # true divide: bit parity with torch's x / step
    clipped = jnp.clip(rt, low, high)              # clamp(rt, valmin, valmax)
    o_ref[...] = (jnp.round(clipped) * s).astype(o_ref.dtype)   # half-to-even round * step


def lsq_activation_quantize(x, act_step_size, *, a_bits=4, binary=False,
                            ternary=True, block_rows=8192):
    """Forward of LSQActivationQuantizer. x: any-shape float array,
    act_step_size: scalar step size (kept in fp32). Returns array with x's shape/dtype."""
    if binary:
        high = 1.0
    elif ternary:
        high = float(2 ** a_bits - 2)
    else:
        high = float(2 ** a_bits - 1)
    low = 0.0

    orig_shape = x.shape
    dtype = x.dtype
    n = x.size
    sub = _sublane_pack(dtype)

    # Lane-dense (rows, 128) layout.  Pad only when n % 128 != 0, and only to the next
    # multiple of 128; aligned activations (the usual case) take the zero-copy path.
    rows = -(-n // _LANE)
    pad = rows * _LANE - n
    x_flat = x.reshape(-1)
    if pad:
        x_flat = jnp.pad(x_flat, (0, pad))          # padded zeros quantize to 0 and are sliced off
    x2 = x_flat.reshape(rows, _LANE)

    # Block size: multiple of the dtype's sublane pack, capped at block_rows.
    row_tile = min(block_rows, _round_up(rows, sub))
    grid = pl.cdiv(rows, row_tile)
    if grid == 1 and row_tile >= 1024:
        # Split one big block into two only when each half is still large (>= ~256 KiB),
        # so v7x's two TensorCores both get work without penalizing small tensors on
        # single-TC v5e/v6e.
        row_tile = _round_up(-(-row_tile // 2), sub)
        grid = pl.cdiv(rows, row_tile)
    elif grid > 2 and grid % 2 == 1:
        # Prefer an even number of grid steps for dual-TC (v7x) load balance; harmless
        # on single-TC chips.
        row_tile = max(sub, _round_up(-(-rows // (grid + 1)), sub))
        grid = pl.cdiv(rows, row_tile)

    # Step size stays fp32 (like the PyTorch Parameter) regardless of x's dtype.
    s_smem = jnp.asarray(act_step_size, dtype=jnp.float32).reshape(1)

    kernel = functools.partial(_lsq_act_quant_kernel, low=low, high=high)

    out = pl.pallas_call(
        kernel,
        out_shape=jax.ShapeDtypeStruct((rows, _LANE), dtype),
        grid=(grid,),
        in_specs=[
            pl.BlockSpec((row_tile, _LANE), lambda i: (i, 0)),
            pl.BlockSpec(memory_space=pltpu.MemorySpace.SMEM),   # scalar step size
        ],
        out_specs=pl.BlockSpec((row_tile, _LANE), lambda i: (i, 0)),
        compiler_params=pltpu.CompilerParams(
            dimension_semantics=("parallel",),
            vmem_limit_bytes=32 * 1024 * 1024,
        ),
        # NOTE: could add input_output_aliases={0: 0} for inference-only use (saves an HBM
        # allocation); omitted because LSQ training backward needs the original x.
    )(x2, s_smem)

    if pad:
        return out.reshape(-1)[:n].reshape(orig_shape)
    return out.reshape(orig_shape)


def _reference(x, act_step_size, *, a_bits=4, binary=False, ternary=True):
    if binary:
        high = 1.0
    elif ternary:
        high = float(2 ** a_bits - 2)
    else:
        high = float(2 ** a_bits - 1)
    rt = x.astype(jnp.float32) / jnp.float32(act_step_size)
    clipped = jnp.clip(rt, 0.0, high)
    return (jnp.round(clipped) * jnp.float32(act_step_size)).astype(x.dtype)


if __name__ == "__main__":
    # Activation-quantizer demo: x ~ conv activation (B, C, H, W) = (2, 4, 16, 16)
    a_bits = 4
    B, C, H, W = 2, 4, 16, 16

    key = jax.random.PRNGKey(0)
    # Mix of negative / in-range / above-range values to exercise both clamps.
    x = jax.random.normal(key, (B, C, H, W), dtype=jnp.float32) * 6.0 + 3.0

    # Module __init__: act_step_size = nn.Parameter(torch.tensor(1.0))
    act_step_size = jnp.float32(1.0)

    out = lsq_activation_quantize(x, act_step_size, a_bits=a_bits)
    out = jax.block_until_ready(out)

    ref = _reference(x, act_step_size, a_bits=a_bits)
    assert out.shape == x.shape
    assert out.dtype == x.dtype
    assert jnp.allclose(out, ref, atol=1e-6), "mismatch vs reference"

    # Also exercise a lane-unaligned shape to check the minimal-pad path.
    x_odd = jax.random.normal(jax.random.PRNGKey(1), (3, 5, 7), dtype=jnp.float32) * 6.0 + 3.0
    out_odd = jax.block_until_ready(lsq_activation_quantize(x_odd, act_step_size, a_bits=a_bits))
    assert jnp.allclose(out_odd, _reference(x_odd, act_step_size, a_bits=a_bits), atol=1e-6)

    print("KERNEL_OK")
</pallas_src>

<mosaic_0001>
module attributes {stable_mosaic.version = 11 : i64} {
  func.func @_lsq_act_quant_kernel(%arg0: i32, %arg1: memref<16x128xf32, #tpu.memory_space<vmem>>, %arg2: memref<1xf32, #tpu.memory_space<smem>>, %arg3: memref<16x128xf32, #tpu.memory_space<vmem>>) attributes {dimension_semantics = [#tpu.dimension_semantics<parallel>], iteration_bounds = array<i64: 1>, scalar_prefetch = 0 : i64, scratch_operands = 0 : i64, tpu.core_type = #tpu.core_type<tc>, window_params = [{transform_indices = @transform_0, window_bounds = array<i64: 16, 128>}, {transform_indices = @transform_1, window_bounds = array<i64: 1>}, {transform_indices = @transform_2, window_bounds = array<i64: 16, 128>}]} {
    %c0 = arith.constant 0 : index
    %0 = memref.load %arg2[%c0] : memref<1xf32, #tpu.memory_space<smem>>
    %c0_0 = arith.constant 0 : index
    %c0_1 = arith.constant 0 : index
    %1 = vector.load %arg1[%c0_0, %c0_1] : memref<16x128xf32, #tpu.memory_space<vmem>>, vector<16x128xf32>
    %2 = vector.broadcast %0 : f32 to vector<16x128xf32>
    %3 = arith.divf %1, %2 : vector<16x128xf32>
    %cst = arith.constant 0.000000e+00 : f32
    %cst_2 = arith.constant 1.400000e+01 : f32
    %4 = vector.broadcast %cst : f32 to vector<16x128xf32>
    %5 = arith.maximumf %4, %3 : vector<16x128xf32>
    %6 = vector.broadcast %cst_2 : f32 to vector<16x128xf32>
    %7 = arith.minimumf %6, %5 : vector<16x128xf32>
    %8 = math.roundeven %7 : vector<16x128xf32>
    %9 = vector.broadcast %0 : f32 to vector<16x128xf32>
    %10 = arith.mulf %8, %9 : vector<16x128xf32>
    %c0_3 = arith.constant 0 : index
    %c0_4 = arith.constant 0 : index
    %11 = vector.load %arg3[%c0_3, %c0_4] : memref<16x128xf32, #tpu.memory_space<vmem>>, vector<16x128xf32>
    tpu.vector_store %arg3[%c0_3, %c0_4], %10 {strides = array<i32>} : memref<16x128xf32, #tpu.memory_space<vmem>>, vector<16x128xf32>,
    return
  }
  func.func @transform_0(%arg0: i32) -> (i32, i32) {
    %c0_i32 = arith.constant 0 : i32
    %c0_i32_0 = arith.constant 0 : i32
    return %arg0, %c0_i32 : i32, i32
  }
  func.func @transform_1(%arg0: i32) -> i32 {
    %c0_i32 = arith.constant 0 : i32
    %c0_i32_0 = arith.constant 0 : i32
    return %c0_i32 : i32
  }
  func.func @transform_2(%arg0: i32) -> (i32, i32) {
    %c0_i32 = arith.constant 0 : i32
    %c0_i32_0 = arith.constant 0 : i32
    return %arg0, %c0_i32 : i32, i32
  }
}

</mosaic_0001>

<llo_original>
// kernel: tpu_custom_call.1
$region0: #{tpu_custom_call.1}
  #allocation0 [shape = 'u32[]', space=smem, size = 0x4, offset = 0x4, fixed_abs, tag = 'smem constant byte address 0x4 - core index']
  #allocation1 [shape = 'u32[144,128]{1,0:T(1,128)}', space=vmem, size = 0x12000, scoped, tag = 'internal scratch']
  #allocation2 [shape = 'f32[1]{0:T(128)S(6)}', space=smem, size = 0x200, scoped, tag = 'scoped memory for tpu_custom_call.1']
  %s0 = inlined_call_operand.hbm [shape: f32[16,128], index: 0, kind: input, shape index: {}]
  %s1 = inlined_call_operand.<no memory space> [shape: f32[1], index: 1, kind: input, shape index: {}]
  %s2 = inlined_call_operand.hbm [shape: f32[16,128], index: 2, kind: output, shape index: {}]
  %s3 = sld [smem:[#allocation0]]
  $region22: #{tpu_custom_call.1} parent=0
    _
  %s5 = ssub.s32 1, %s3
  %s6 = scalar_select 0, %s5, %s3
  %7 = sst [smem:[#allocation2]] %s1
  $region1: #{tpu_custom_call.1} parent=0
    #allocation3 [shape = 'u8[8192]{0}', space=vmem, size = 0x2000, scoped, tag = 'input window, operand 0, single buffered']
    #allocation4 [shape = 's32[1]{0}', space=sflag, size = 0x4, scoped, tag = 'scoped memory for tpu_custom_call.1']
    #allocation5 [shape = 's32[1]{0}', space=sflag, size = 0x4, scoped, tag = 'scoped memory for tpu_custom_call.1']
    #allocation6 [shape = 'u8[8192]{0}', space=vmem, size = 0x2000, scoped, tag = 'output window, operand 0, single buffered']
    %8 = vsyncpa [#allocation4], 0
    %9 = vsyncpa [#allocation5], 0
    // Predicated region
    $region2: #{tpu_custom_call.1} parent=1 // pred_check
      _
    $region3: #{tpu_custom_call.1} parent=1 // pred_check_branch
      %11 = sbr.rel (0) target = $region5
    $region4: #{tpu_custom_call.1} parent=1 // pred_region
      %s13 = ssub.s32 256, 256
      %14 = vsyncadd [#allocation4], %s13
      %s15 = sshll.u32 [#allocation3], 4
      %s16 = int_to_ptr.vmem [resolvable:$true] %s15
      %21 = dma.hbm_to_vmem [thread:$0]  %s0, 256, %s16, [#allocation4], 128, 128, 8
    $region5: #{tpu_custom_call.1} parent=1 // pred_fallthru
      _
    // Predicated region
    $region6: #{tpu_custom_call.1} parent=1 // pred_check
      _
    $region7: #{tpu_custom_call.1} parent=1 // pred_check_branch
      %23 = sbr.rel (0) target = $region9
    $region8: #{tpu_custom_call.1} parent=1 // pred_region
      _
    $region9: #{tpu_custom_call.1} parent=1 // pred_fallthru
      _
    // Predicated region
    $region10: #{tpu_custom_call.1} parent=1 // pred_check
      _
    $region11: #{tpu_custom_call.1} parent=1 // pred_check_branch
      %25 = sbr.rel (0) target = $region13
    $region12: #{tpu_custom_call.1} parent=1 // pred_region
      %26 = dma.done [#allocation4], 256
    $region13: #{tpu_custom_call.1} parent=1 // pred_fallthru
      _
    %s27 = sld [smem:[#allocation2]]
    %v28 = vld [vmem:[#allocation3] sm:$0xff]
    %v29 = vld [vmem:[#allocation3 + $0x8] sm:$0xff]
    %v30 = vstv %s27
    %v31 = vrcp.pop %v30
    %v32 = vmul.f32 %v28, %v31
    %v33 = vmul.f32 %v29, %v31
    %v34 = vmax.f32 %v32, 0.0
    %v35 = vmax.f32 %v33, 0.0
    %v36 = vmin.f32 %v34, 14.0
    %v37 = vmin.f32 %v35, 14.0
    %v38 = vround.ne.pseudo %v36
    %v39 = vround.ne.pseudo %v37
    %v40 = vmul.f32 %v38, %v30
    %v41 = vmul.f32 %v39, %v30
    %42 = vst [vmem:[#allocation6] sm:$0xff] %v40
    %43 = vst [vmem:[#allocation6 + $0x8] sm:$0xff] %v41
    // Predicated region
    $region14: #{tpu_custom_call.1} parent=1 // pred_check
      _
    $region15: #{tpu_custom_call.1} parent=1 // pred_check_branch
      %45 = sbr.rel (0) target = $region17
    $region16: #{tpu_custom_call.1} parent=1 // pred_region
      %s47 = ssub.s32 256, 256
      %48 = vsyncadd [#allocation5], %s47
      %s49 = sshll.u32 [#allocation6], 4
      %s50 = int_to_ptr.vmem [resolvable:$true] %s49
      %55 = dma.vmem_to_hbm [thread:$0]  %s50, 256, %s2, [#allocation5], 128, 128, 8
    $region17: #{tpu_custom_call.1} parent=1 // pred_fallthru
      _
    // Predicated region
    $region18: #{tpu_custom_call.1} parent=1 // pred_check
      _
    $region19: #{tpu_custom_call.1} parent=1 // pred_check_branch
      %57 = sbr.rel (0) target = $region21
    $region20: #{tpu_custom_call.1} parent=1 // pred_region
      %58 = dma.done [#allocation5], 256
    $region21: #{tpu_custom_call.1} parent=1 // pred_fallthru
      _
    %59 = vsyncpa [#allocation4], 1
    %60 = vsyncpa [#allocation5], 1

</llo_original>
